<compile_context>
chip_gen: v5e
topology: v5e:2x2
jax: 0.10.0
libtpu: 0.0.40
codegen_flags: <defaults>
</compile_context>

<pallas_src>
import math

import jax
import jax.numpy as jnp
import numpy as np
from jax.experimental import pallas as pl
from jax.experimental.pallas import tpu as pltpu


def _round_up(x, m):
    return (x + m - 1) // m * m


def mlp_ce_kernel(x_ref, w1_ref, b1_ref, w2_ref, b2_ref, w3_ref, b3_ref,
                  w4_ref, b4_ref, w5_ref, b5_ref, y_ref, loss_ref):
    """One batch tile: 5-layer tanh MLP + per-row softmax cross-entropy.

    Writes the per-row loss (logsumexp - picked_logit) for this tile; the mean
    over the real batch is taken in the JAX wrapper, so the batch grid axis has
    no cross-step dependency and can be fully parallel.
    """
    f32 = jnp.float32

    def linear(h, w_ref, b_ref):
        # Inputs may arrive bf16 (bandwidth optimization); all math is f32.
        return (jnp.dot(h, w_ref[...].astype(f32), preferred_element_type=f32)
                + b_ref[...].astype(f32))

    h = x_ref[...].astype(f32)
    h = jnp.tanh(linear(h, w1_ref, b1_ref))
    h = jnp.tanh(linear(h, w2_ref, b2_ref))
    h = jnp.tanh(linear(h, w3_ref, b3_ref))
    h = jnp.tanh(linear(h, w4_ref, b4_ref))
    logits = linear(h, w5_ref, b5_ref)                       # (TB, d_out) f32

    y = y_ref[...]                                           # (TB, 1) int32
    d_out = logits.shape[-1]
    if d_out == 2:
        # 2-class specialisation: no cross-lane reductions, one exp/log pair.
        # NOTE: labels outside [0, 2) silently select class 1 (PyTorch raises).
        l0 = logits[:, 0:1]
        l1 = logits[:, 1:2]
        m = jnp.maximum(l0, l1)
        lse = m + jnp.log(jnp.exp(l0 - m) + jnp.exp(l1 - m))  # (TB, 1)
        picked = jnp.where(y == 0, l0, l1)                    # (TB, 1)
    else:
        # General path (kept for other d_out): onehot trick avoids a gather.
        m = jnp.max(logits, axis=-1, keepdims=True)
        lse = m + jnp.log(jnp.sum(jnp.exp(logits - m), axis=-1, keepdims=True))
        classes = jax.lax.broadcasted_iota(jnp.int32, logits.shape, 1)
        onehot = (y == classes).astype(f32)
        picked = jnp.sum(onehot * logits, axis=-1, keepdims=True)

    loss_ref[...] = lse - picked                              # per-row loss


def net_forward(c, labels, params, *, tile_b=512, x_dtype=None):
    """c: (B, d_in) float, labels: (B,) int, params: 5x (W (d_in,d_out), b (d_out,)).

    Returns the scalar mean cross-entropy loss, i.e. Net.forward((c, labels)).
    tile_b: rows per grid step (>=512 recommended; cap lower on v7x if VMEM-tight).
    x_dtype: optional narrow dtype (e.g. jnp.bfloat16) for the x HBM stream.
    """
    B, d_in = c.shape
    assert len(params) == 5, "kernel signature is specialised for the 5-layer Net"

    if x_dtype is not None:
        c = c.astype(x_dtype)   # halve HBM traffic on the dominant x stream

    # Batch tile: multiple of 8 (sublanes), capped at tile_b; pad B up to it.
    tb = min(_round_up(tile_b, 8), _round_up(B, 8))
    b_pad = _round_up(B, tb)
    num_tiles = b_pad // tb

    y = labels.astype(jnp.int32).reshape(B, 1)
    if b_pad != B:
        c = jnp.pad(c, ((0, b_pad - B), (0, 0)))
        y = jnp.pad(y, ((0, b_pad - B), (0, 0)))   # padded rows sliced off below

    flat_args = [c]
    in_specs = [pl.BlockSpec((tb, d_in), lambda i: (i, 0))]
    for w, b in params:
        # Constant index_map -> weights/biases fetched once, VMEM-resident
        # across all grid steps (never re-DMA'd).
        flat_args.append(w)
        in_specs.append(pl.BlockSpec(w.shape, lambda i: (0, 0)))
        flat_args.append(b.reshape(1, -1))
        in_specs.append(pl.BlockSpec((1, b.shape[0]), lambda i: (0, 0)))
    flat_args.append(y)
    in_specs.append(pl.BlockSpec((tb, 1), lambda i: (i, 0)))

    per_row = pl.pallas_call(
        mlp_ce_kernel,
        out_shape=jax.ShapeDtypeStruct((b_pad, 1), jnp.float32),
        grid=(num_tiles,),
        in_specs=in_specs,
        out_specs=pl.BlockSpec((tb, 1), lambda i: (i, 0)),
        compiler_params=pltpu.CompilerParams(
            dimension_semantics=("parallel",)),   # shards tiles across TCs (v7x)
    )(*flat_args)

    # Epilogue: mean over the *real* batch rows (padding rows dropped).
    return jnp.sum(per_row[:B, 0]) / B


def init_params(key, d_layers=(30, 40, 20, 10), d_in=16, d_out=2):
    """torch.nn.Linear default init (U[-1/sqrt(fan_in), 1/sqrt(fan_in)]),
    with weights stored transposed as (fan_in, fan_out)."""
    dims = [d_in] + list(d_layers) + [d_out]
    params = []
    for i in range(len(dims) - 1):
        fan_in, fan_out = dims[i], dims[i + 1]
        bound = 1.0 / math.sqrt(fan_in)
        key, kw, kb = jax.random.split(key, 3)
        w = jax.random.uniform(kw, (fan_in, fan_out), jnp.float32, -bound, bound)
        b = jax.random.uniform(kb, (fan_out,), jnp.float32, -bound, bound)
        params.append((w, b))
    return params


def net_forward_ref(c, labels, params):
    """Pure-JAX reference (same math, no Pallas)."""
    h = c
    for i, (w, b) in enumerate(params):
        h = h @ w + b
        if i < len(params) - 1:
            h = jnp.tanh(h)
    logits = h
    lse = jax.scipy.special.logsumexp(logits, axis=-1)
    picked = jnp.take_along_axis(logits, labels[:, None].astype(jnp.int32), axis=-1)[:, 0]
    return jnp.mean(lse - picked)


if __name__ == "__main__":
    key = jax.random.PRNGKey(0)
    k_param, k_x, k_x2, k_y2 = jax.random.split(key, 4)

    d_in, d_out = 16, 2
    params = init_params(k_param, d_layers=(30, 40, 20, 10), d_in=d_in, d_out=d_out)

    # --- small shapes matching the module's forward input x = (features, labels) ---
    B = 2
    c = jax.random.normal(k_x, (B, d_in), dtype=jnp.float32)
    labels = jnp.array([0, 1], dtype=jnp.int32)

    loss = jax.block_until_ready(net_forward(c, labels, params))
    loss_ref = jax.block_until_ready(net_forward_ref(c, labels, params))
    np.testing.assert_allclose(np.asarray(loss), np.asarray(loss_ref), rtol=1e-5, atol=1e-5)

    # --- larger batch: exercises the batch grid (4 parallel 512-row tiles) ---
    B2 = 2048
    c2 = jax.random.normal(k_x2, (B2, d_in), dtype=jnp.float32)
    labels2 = jax.random.randint(k_y2, (B2,), 0, d_out, dtype=jnp.int32)

    loss2 = jax.block_until_ready(net_forward(c2, labels2, params, tile_b=512))
    loss2_ref = jax.block_until_ready(net_forward_ref(c2, labels2, params))
    np.testing.assert_allclose(np.asarray(loss2), np.asarray(loss2_ref), rtol=1e-4, atol=1e-4)

    # --- bf16 x stream (halves HBM traffic); compare vs. reference that sees
    #     the same bf16-rounded inputs (compute stays f32 inside the kernel) ---
    loss3 = jax.block_until_ready(
        net_forward(c2, labels2, params, tile_b=512, x_dtype=jnp.bfloat16))
    c2_rounded = c2.astype(jnp.bfloat16).astype(jnp.float32)
    loss3_ref = jax.block_until_ready(net_forward_ref(c2_rounded, labels2, params))
    np.testing.assert_allclose(np.asarray(loss3), np.asarray(loss3_ref), rtol=1e-4, atol=1e-4)

    print("KERNEL_OK")
</pallas_src>

<mosaic_0001>
module attributes {stable_mosaic.version = 11 : i64} {
  func.func @mlp_ce_kernel(%arg0: i32, %arg1: memref<8x16xf32, #tpu.memory_space<vmem>>, %arg2: memref<16x30xf32, #tpu.memory_space<vmem>>, %arg3: memref<1x30xf32, #tpu.memory_space<vmem>>, %arg4: memref<30x40xf32, #tpu.memory_space<vmem>>, %arg5: memref<1x40xf32, #tpu.memory_space<vmem>>, %arg6: memref<40x20xf32, #tpu.memory_space<vmem>>, %arg7: memref<1x20xf32, #tpu.memory_space<vmem>>, %arg8: memref<20x10xf32, #tpu.memory_space<vmem>>, %arg9: memref<1x10xf32, #tpu.memory_space<vmem>>, %arg10: memref<10x2xf32, #tpu.memory_space<vmem>>, %arg11: memref<1x2xf32, #tpu.memory_space<vmem>>, %arg12: memref<8x1xi32, #tpu.memory_space<vmem>>, %arg13: memref<8x1xf32, #tpu.memory_space<vmem>>) attributes {dimension_semantics = [#tpu.dimension_semantics<parallel>], iteration_bounds = array<i64: 1>, scalar_prefetch = 0 : i64, scratch_operands = 0 : i64, tpu.core_type = #tpu.core_type<tc>, window_params = [{transform_indices = @transform_0, window_bounds = array<i64: 8, 16>}, {pipeline_mode = #tpu.pipeline_mode<synchronous>, transform_indices = @transform_1, window_bounds = array<i64: 16, 30>}, {pipeline_mode = #tpu.pipeline_mode<synchronous>, transform_indices = @transform_2, window_bounds = array<i64: 1, 30>}, {pipeline_mode = #tpu.pipeline_mode<synchronous>, transform_indices = @transform_3, window_bounds = array<i64: 30, 40>}, {pipeline_mode = #tpu.pipeline_mode<synchronous>, transform_indices = @transform_4, window_bounds = array<i64: 1, 40>}, {pipeline_mode = #tpu.pipeline_mode<synchronous>, transform_indices = @transform_5, window_bounds = array<i64: 40, 20>}, {pipeline_mode = #tpu.pipeline_mode<synchronous>, transform_indices = @transform_6, window_bounds = array<i64: 1, 20>}, {pipeline_mode = #tpu.pipeline_mode<synchronous>, transform_indices = @transform_7, window_bounds = array<i64: 20, 10>}, {pipeline_mode = #tpu.pipeline_mode<synchronous>, transform_indices = @transform_8, window_bounds = array<i64: 1, 10>}, {pipeline_mode = #tpu.pipeline_mode<synchronous>, transform_indices = @transform_9, window_bounds = array<i64: 10, 2>}, {pipeline_mode = #tpu.pipeline_mode<synchronous>, transform_indices = @transform_10, window_bounds = array<i64: 1, 2>}, {transform_indices = @transform_11, window_bounds = array<i64: 8, 1>}, {transform_indices = @transform_12, window_bounds = array<i64: 8, 1>}]} {
    %c0 = arith.constant 0 : index
    %c0_0 = arith.constant 0 : index
    %0 = vector.load %arg1[%c0, %c0_0] : memref<8x16xf32, #tpu.memory_space<vmem>>, vector<8x16xf32>
    %c0_1 = arith.constant 0 : index
    %c0_2 = arith.constant 0 : index
    %1 = vector.load %arg2[%c0_1, %c0_2] : memref<16x30xf32, #tpu.memory_space<vmem>>, vector<16x30xf32>
    %cst = arith.constant dense<0.000000e+00> : vector<8x30xf32>
    %2 = tpu.matmul %0, %1, %cst {dimension_numbers = #tpu.dot_dimension_numbers<[1], [0], [0], [1], [0, 0, 1, 1], [], []>} : vector<8x16xf32>, vector<16x30xf32>, vector<8x30xf32> -> vector<8x30xf32>
    %c0_3 = arith.constant 0 : index
    %c0_4 = arith.constant 0 : index
    %3 = vector.load %arg3[%c0_3, %c0_4] : memref<1x30xf32, #tpu.memory_space<vmem>>, vector<1x30xf32>
    %4 = vector.broadcast %3 : vector<1x30xf32> to vector<8x30xf32>
    %5 = arith.addf %2, %4 : vector<8x30xf32>
    %6 = math.tanh %5 : vector<8x30xf32>
    %c0_5 = arith.constant 0 : index
    %c0_6 = arith.constant 0 : index
    %7 = vector.load %arg4[%c0_5, %c0_6] : memref<30x40xf32, #tpu.memory_space<vmem>>, vector<30x40xf32>
    %cst_7 = arith.constant dense<0.000000e+00> : vector<8x40xf32>
    %8 = tpu.matmul %6, %7, %cst_7 {dimension_numbers = #tpu.dot_dimension_numbers<[1], [0], [0], [1], [0, 0, 1, 1], [], []>} : vector<8x30xf32>, vector<30x40xf32>, vector<8x40xf32> -> vector<8x40xf32>
    %c0_8 = arith.constant 0 : index
    %c0_9 = arith.constant 0 : index
    %9 = vector.load %arg5[%c0_8, %c0_9] : memref<1x40xf32, #tpu.memory_space<vmem>>, vector<1x40xf32>
    %10 = vector.broadcast %9 : vector<1x40xf32> to vector<8x40xf32>
    %11 = arith.addf %8, %10 : vector<8x40xf32>
    %12 = math.tanh %11 : vector<8x40xf32>
    %c0_10 = arith.constant 0 : index
    %c0_11 = arith.constant 0 : index
    %13 = vector.load %arg6[%c0_10, %c0_11] : memref<40x20xf32, #tpu.memory_space<vmem>>, vector<40x20xf32>
    %cst_12 = arith.constant dense<0.000000e+00> : vector<8x20xf32>
    %14 = tpu.matmul %12, %13, %cst_12 {dimension_numbers = #tpu.dot_dimension_numbers<[1], [0], [0], [1], [0, 0, 1, 1], [], []>} : vector<8x40xf32>, vector<40x20xf32>, vector<8x20xf32> -> vector<8x20xf32>
    %c0_13 = arith.constant 0 : index
    %c0_14 = arith.constant 0 : index
    %15 = vector.load %arg7[%c0_13, %c0_14] : memref<1x20xf32, #tpu.memory_space<vmem>>, vector<1x20xf32>
    %16 = vector.broadcast %15 : vector<1x20xf32> to vector<8x20xf32>
    %17 = arith.addf %14, %16 : vector<8x20xf32>
    %18 = math.tanh %17 : vector<8x20xf32>
    %c0_15 = arith.constant 0 : index
    %c0_16 = arith.constant 0 : index
    %19 = vector.load %arg8[%c0_15, %c0_16] : memref<20x10xf32, #tpu.memory_space<vmem>>, vector<20x10xf32>
    %cst_17 = arith.constant dense<0.000000e+00> : vector<8x10xf32>
    %20 = tpu.matmul %18, %19, %cst_17 {dimension_numbers = #tpu.dot_dimension_numbers<[1], [0], [0], [1], [0, 0, 1, 1], [], []>} : vector<8x20xf32>, vector<20x10xf32>, vector<8x10xf32> -> vector<8x10xf32>
    %c0_18 = arith.constant 0 : index
    %c0_19 = arith.constant 0 : index
    %21 = vector.load %arg9[%c0_18, %c0_19] : memref<1x10xf32, #tpu.memory_space<vmem>>, vector<1x10xf32>
    %22 = vector.broadcast %21 : vector<1x10xf32> to vector<8x10xf32>
    %23 = arith.addf %20, %22 : vector<8x10xf32>
    %24 = math.tanh %23 : vector<8x10xf32>
    %c0_20 = arith.constant 0 : index
    %c0_21 = arith.constant 0 : index
    %25 = vector.load %arg10[%c0_20, %c0_21] : memref<10x2xf32, #tpu.memory_space<vmem>>, vector<10x2xf32>
    %cst_22 = arith.constant dense<0.000000e+00> : vector<8x2xf32>
    %26 = tpu.matmul %24, %25, %cst_22 {dimension_numbers = #tpu.dot_dimension_numbers<[1], [0], [0], [1], [0, 0, 1, 1], [], []>} : vector<8x10xf32>, vector<10x2xf32>, vector<8x2xf32> -> vector<8x2xf32>
    %c0_23 = arith.constant 0 : index
    %c0_24 = arith.constant 0 : index
    %27 = vector.load %arg11[%c0_23, %c0_24] : memref<1x2xf32, #tpu.memory_space<vmem>>, vector<1x2xf32>
    %28 = vector.broadcast %27 : vector<1x2xf32> to vector<8x2xf32>
    %29 = arith.addf %26, %28 : vector<8x2xf32>
    %c0_25 = arith.constant 0 : index
    %c0_26 = arith.constant 0 : index
    %30 = vector.load %arg12[%c0_25, %c0_26] : memref<8x1xi32, #tpu.memory_space<vmem>>, vector<8x1xi32>
    %31 = vector.extract_strided_slice %29 {offsets = [0, 0], sizes = [8, 1], strides = [1, 1]} : vector<8x2xf32> to vector<8x1xf32>
    %32 = vector.extract_strided_slice %29 {offsets = [0, 1], sizes = [8, 1], strides = [1, 1]} : vector<8x2xf32> to vector<8x1xf32>
    %33 = arith.maximumf %31, %32 : vector<8x1xf32>
    %34 = arith.subf %31, %33 : vector<8x1xf32>
    %35 = math.exp %34 : vector<8x1xf32>
    %36 = arith.subf %32, %33 : vector<8x1xf32>
    %37 = math.exp %36 : vector<8x1xf32>
    %38 = arith.addf %35, %37 : vector<8x1xf32>
    %39 = math.log %38 : vector<8x1xf32>
    %40 = arith.addf %33, %39 : vector<8x1xf32>
    %c0_i32 = arith.constant 0 : i32
    %41 = vector.broadcast %c0_i32 : i32 to vector<8x1xi32>
    %42 = arith.cmpi eq, %30, %41 : vector<8x1xi32>
    %43 = arith.select %42, %31, %32 : vector<8x1xi1>, vector<8x1xf32>
    %44 = arith.subf %40, %43 : vector<8x1xf32>
    %c0_27 = arith.constant 0 : index
    %c0_28 = arith.constant 0 : index
    %45 = vector.load %arg13[%c0_27, %c0_28] : memref<8x1xf32, #tpu.memory_space<vmem>>, vector<8x1xf32>
    tpu.vector_store %arg13[%c0_27, %c0_28], %44 {strides = array<i32>} : memref<8x1xf32, #tpu.memory_space<vmem>>, vector<8x1xf32>,
    return
  }
  func.func @transform_0(%arg0: i32) -> (i32, i32) {
    %c0_i32 = arith.constant 0 : i32
    %c0_i32_0 = arith.constant 0 : i32
    return %arg0, %c0_i32 : i32, i32
  }
  func.func @transform_1(%arg0: i32) -> (i32, i32) {
    %c0_i32 = arith.constant 0 : i32
    %c0_i32_0 = arith.constant 0 : i32
    %c0_i32_1 = arith.constant 0 : i32
    return %c0_i32, %c0_i32_0 : i32, i32
  }
  func.func @transform_2(%arg0: i32) -> (i32, i32) {
    %c0_i32 = arith.constant 0 : i32
    %c0_i32_0 = arith.constant 0 : i32
    %c0_i32_1 = arith.constant 0 : i32
    return %c0_i32, %c0_i32_0 : i32, i32
  }
  func.func @transform_3(%arg0: i32) -> (i32, i32) {
    %c0_i32 = arith.constant 0 : i32
    %c0_i32_0 = arith.constant 0 : i32
    %c0_i32_1 = arith.constant 0 : i32
    return %c0_i32, %c0_i32_0 : i32, i32
  }
  func.func @transform_4(%arg0: i32) -> (i32, i32) {
    %c0_i32 = arith.constant 0 : i32
    %c0_i32_0 = arith.constant 0 : i32
    %c0_i32_1 = arith.constant 0 : i32
    return %c0_i32, %c0_i32_0 : i32, i32
  }
  func.func @transform_5(%arg0: i32) -> (i32, i32) {
    %c0_i32 = arith.constant 0 : i32
    %c0_i32_0 = arith.constant 0 : i32
    %c0_i32_1 = arith.constant 0 : i32
    return %c0_i32, %c0_i32_0 : i32, i32
  }
  func.func @transform_6(%arg0: i32) -> (i32, i32) {
    %c0_i32 = arith.constant 0 : i32
    %c0_i32_0 = arith.constant 0 : i32
    %c0_i32_1 = arith.constant 0 : i32
    return %c0_i32, %c0_i32_0 : i32, i32
  }
  func.func @transform_7(%arg0: i32) -> (i32, i32) {
    %c0_i32 = arith.constant 0 : i32
    %c0_i32_0 = arith.constant 0 : i32
    %c0_i32_1 = arith.constant 0 : i32
    return %c0_i32, %c0_i32_0 : i32, i32
  }
  func.func @transform_8(%arg0: i32) -> (i32, i32) {
    %c0_i32 = arith.constant 0 : i32
    %c0_i32_0 = arith.constant 0 : i32
    %c0_i32_1 = arith.constant 0 : i32
    return %c0_i32, %c0_i32_0 : i32, i32
  }
  func.func @transform_9(%arg0: i32) -> (i32, i32) {
    %c0_i32 = arith.constant 0 : i32
    %c0_i32_0 = arith.constant 0 : i32
    %c0_i32_1 = arith.constant 0 : i32
    return %c0_i32, %c0_i32_0 : i32, i32
  }
  func.func @transform_10(%arg0: i32) -> (i32, i32) {
    %c0_i32 = arith.constant 0 : i32
    %c0_i32_0 = arith.constant 0 : i32
    %c0_i32_1 = arith.constant 0 : i32
    return %c0_i32, %c0_i32_0 : i32, i32
  }
  func.func @transform_11(%arg0: i32) -> (i32, i32) {
    %c0_i32 = arith.constant 0 : i32
    %c0_i32_0 = arith.constant 0 : i32
    return %arg0, %c0_i32 : i32, i32
  }
  func.func @transform_12(%arg0: i32) -> (i32, i32) {
    %c0_i32 = arith.constant 0 : i32
    %c0_i32_0 = arith.constant 0 : i32
    return %arg0, %c0_i32 : i32, i32
  }
}

</mosaic_0001>

<llo_original>
// kernel: tpu_custom_call.1
$region0: #{tpu_custom_call.1}
  #allocation0 [shape = 'u32[]', space=smem, size = 0x4, offset = 0x4, fixed_abs, tag = 'smem constant byte address 0x4 - core index']
  #allocation1 [shape = 'u32[72,128]{1,0:T(1,128)}', space=vmem, size = 0x9000, scoped, tag = 'internal scratch']
  %s0 = inlined_call_operand.vmem [shape: f32[8,16], index: 0, kind: input, shape index: {}]
  %s1 = inlined_call_operand.vmem [shape: f32[16,30], index: 1, kind: input, shape index: {}]
  %s2 = inlined_call_operand.vmem [shape: f32[1,30], index: 2, kind: input, shape index: {}]
  %s3 = inlined_call_operand.vmem [shape: f32[30,40], index: 3, kind: input, shape index: {}]
  %s4 = inlined_call_operand.vmem [shape: f32[1,40], index: 4, kind: input, shape index: {}]
  %s5 = inlined_call_operand.vmem [shape: f32[40,20], index: 5, kind: input, shape index: {}]
  %s6 = inlined_call_operand.vmem [shape: f32[1,20], index: 6, kind: input, shape index: {}]
  %s7 = inlined_call_operand.vmem [shape: f32[20,10], index: 7, kind: input, shape index: {}]
  %s8 = inlined_call_operand.vmem [shape: f32[1,10], index: 8, kind: input, shape index: {}]
  %s9 = inlined_call_operand.vmem [shape: f32[10,2], index: 9, kind: input, shape index: {}]
  %s10 = inlined_call_operand.vmem [shape: f32[1,2], index: 10, kind: input, shape index: {}]
  %s11 = inlined_call_operand.vmem [shape: s32[8,1], index: 11, kind: input, shape index: {}]
  %s12 = inlined_call_operand.vmem [shape: f32[8,1], index: 12, kind: output, shape index: {}]
  %s13 = sld [smem:[#allocation0]]
  $region58: #{tpu_custom_call.1} parent=0
    _
  %s15 = ssub.s32 1, %s13
  %s16 = scalar_select 0, %s15, %s13
  // Predicated region
  $region2: #{tpu_custom_call.1} parent=0 // pred_check
    _
  $region3: #{tpu_custom_call.1} parent=0 // pred_check_branch
    %18 = sbr.rel (0) target = $region5
  $region4: #{tpu_custom_call.1} parent=0 // pred_region
    _
  $region5: #{tpu_custom_call.1} parent=0 // pred_fallthru
    _
  // Predicated region
  $region6: #{tpu_custom_call.1} parent=0 // pred_check
    _
  $region7: #{tpu_custom_call.1} parent=0 // pred_check_branch
    %20 = sbr.rel (0) target = $region9
  $region8: #{tpu_custom_call.1} parent=0 // pred_region
    _
  $region9: #{tpu_custom_call.1} parent=0 // pred_fallthru
    _
  // Predicated region
  $region10: #{tpu_custom_call.1} parent=0 // pred_check
    _
  $region11: #{tpu_custom_call.1} parent=0 // pred_check_branch
    %22 = sbr.rel (0) target = $region13
  $region12: #{tpu_custom_call.1} parent=0 // pred_region
    _
  $region13: #{tpu_custom_call.1} parent=0 // pred_fallthru
    _
  // Predicated region
  $region14: #{tpu_custom_call.1} parent=0 // pred_check
    _
  $region15: #{tpu_custom_call.1} parent=0 // pred_check_branch
    %24 = sbr.rel (0) target = $region17
  $region16: #{tpu_custom_call.1} parent=0 // pred_region
    _
  $region17: #{tpu_custom_call.1} parent=0 // pred_fallthru
    _
  // Predicated region
  $region18: #{tpu_custom_call.1} parent=0 // pred_check
    _
  $region19: #{tpu_custom_call.1} parent=0 // pred_check_branch
    %26 = sbr.rel (0) target = $region21
  $region20: #{tpu_custom_call.1} parent=0 // pred_region
    _
  $region21: #{tpu_custom_call.1} parent=0 // pred_fallthru
    _
  // Predicated region
  $region22: #{tpu_custom_call.1} parent=0 // pred_check
    _
  $region23: #{tpu_custom_call.1} parent=0 // pred_check_branch
    %28 = sbr.rel (0) target = $region25
  $region24: #{tpu_custom_call.1} parent=0 // pred_region
    _
  $region25: #{tpu_custom_call.1} parent=0 // pred_fallthru
    _
  // Predicated region
  $region26: #{tpu_custom_call.1} parent=0 // pred_check
    _
  $region27: #{tpu_custom_call.1} parent=0 // pred_check_branch
    %30 = sbr.rel (0) target = $region29
  $region28: #{tpu_custom_call.1} parent=0 // pred_region
    _
  $region29: #{tpu_custom_call.1} parent=0 // pred_fallthru
    _
  // Predicated region
  $region30: #{tpu_custom_call.1} parent=0 // pred_check
    _
  $region31: #{tpu_custom_call.1} parent=0 // pred_check_branch
    %32 = sbr.rel (0) target = $region33
  $region32: #{tpu_custom_call.1} parent=0 // pred_region
    _
  $region33: #{tpu_custom_call.1} parent=0 // pred_fallthru
    _
  // Predicated region
  $region34: #{tpu_custom_call.1} parent=0 // pred_check
    _
  $region35: #{tpu_custom_call.1} parent=0 // pred_check_branch
    %34 = sbr.rel (0) target = $region37
  $region36: #{tpu_custom_call.1} parent=0 // pred_region
    _
  $region37: #{tpu_custom_call.1} parent=0 // pred_fallthru
    _
  // Predicated region
  $region38: #{tpu_custom_call.1} parent=0 // pred_check
    _
  $region39: #{tpu_custom_call.1} parent=0 // pred_check_branch
    %36 = sbr.rel (0) target = $region41
  $region40: #{tpu_custom_call.1} parent=0 // pred_region
    _
  $region41: #{tpu_custom_call.1} parent=0 // pred_fallthru
    _
  // Predicated region
  $region42: #{tpu_custom_call.1} parent=0 // pred_check
    _
  $region43: #{tpu_custom_call.1} parent=0 // pred_check_branch
    %38 = sbr.rel (0) target = $region45
  $region44: #{tpu_custom_call.1} parent=0 // pred_region
    _
  $region45: #{tpu_custom_call.1} parent=0 // pred_fallthru
    _
  // Predicated region
  $region46: #{tpu_custom_call.1} parent=0 // pred_check
    _
  $region47: #{tpu_custom_call.1} parent=0 // pred_check_branch
    %40 = sbr.rel (0) target = $region49
  $region48: #{tpu_custom_call.1} parent=0 // pred_region
    _
  $region49: #{tpu_custom_call.1} parent=0 // pred_fallthru
    _
  %v41 = vld [vmem:[%s0] sm:$0xff]
  %v42 = vld [vmem:[%s1] sm:$0xff]
  %v43 = vld [vmem:[%s1 + $0x8] sm:$0xff]
  %v44 = vld [vmem:[%s2] sm:$0x1]
  %v46 = vperm.slane %v44, 0
  %vm48 = vcmask 130048
  %v50 = vsel %vm48, %v41, 0
  %52 = vmatpush.msra.mxu0 0.0
  %53 = vmatpush.msra.mxu0 0.0
  %54 = vmatpush.msra.mxu0 0.0
  %55 = vmatpush.msra.mxu0 0.0
  %56 = vmatpush.msra.mxu0 0.0
  %57 = vmatpush.msra.mxu0 0.0
  %58 = vmatpush.msra.mxu0 0.0
  %59 = vmatpush.msra.mxu0 0.0
  %60 = vmatpush.msra.mxu0 0.0
  %61 = vmatpush.msra.mxu0 0.0
  %62 = vmatpush.msra.mxu0 0.0
  %63 = vmatpush.msra.mxu0 0.0
  %64 = vmatpush.msra.mxu0 0.0
  %65 = vmatpush.msra.mxu0 0.0
  %66 = vmatpush.msra.mxu0 %v43
  %67 = vmatpush.msra.mxu0 %v42
  %68 = vmatmul.f32.gmra.mxu0 %v50
  %v69 = vpop.f32.mrf.mxu0
  %v70 = vadd.f32 %v46, %v69
  %71 = vdwg.mxu0
  %v72 = vtanh.pop %v70
  %v73 = vld [vmem:[%s3] sm:$0xff]
  %v74 = vld [vmem:[%s3 + $0x8] sm:$0xff]
  %v75 = vld [vmem:[%s3 + $0x10] sm:$0xff]
  %v76 = vld [vmem:[%s3 + $0x18] sm:$0x3f]
  %v77 = vld [vmem:[%s4] sm:$0x1]
  %v79 = vperm.slane %v77, 0
  %vm81 = vcmask 244736
  %v83 = vsel %vm81, %v72, 0
  %vm85 = vcmask 1045504
  %v87 = vsel %vm85, %v76, 0
  %89 = vmatpush.msra.mxu0 0.0
  %90 = vmatpush.msra.mxu0 0.0
  %91 = vmatpush.msra.mxu0 0.0
  %92 = vmatpush.msra.mxu0 0.0
  %93 = vmatpush.msra.mxu0 0.0
  %94 = vmatpush.msra.mxu0 0.0
  %95 = vmatpush.msra.mxu0 0.0
  %96 = vmatpush.msra.mxu0 0.0
  %97 = vmatpush.msra.mxu0 0.0
  %98 = vmatpush.msra.mxu0 0.0
  %99 = vmatpush.msra.mxu0 0.0
  %100 = vmatpush.msra.mxu0 0.0
  %101 = vmatpush.msra.mxu0 %v87
  %102 = vmatpush.msra.mxu0 %v75
  %103 = vmatpush.msra.mxu0 %v74
  %104 = vmatpush.msra.mxu0 %v73
  %105 = vmatmul.f32.gmra.mxu0 %v83
  %v106 = vpop.f32.mrf.mxu0
  %v107 = vadd.f32 %v79, %v106
  %108 = vdwg.mxu0
  %v109 = vtanh.pop %v107
  %v110 = vld [vmem:[%s5] sm:$0xff]
  %v111 = vld [vmem:[%s5 + $0x8] sm:$0xff]
  %v112 = vld [vmem:[%s5 + $0x10] sm:$0xff]
  %v113 = vld [vmem:[%s5 + $0x18] sm:$0xff]
  %v114 = vld [vmem:[%s5 + $0x20] sm:$0xff]
  %v115 = vld [vmem:[%s6] sm:$0x1]
  %v117 = vperm.slane %v115, 0
  %vm119 = vcmask 326656
  %v121 = vsel %vm119, %v109, 0
  %123 = vmatpush.msra.mxu0 0.0
  %124 = vmatpush.msra.mxu0 0.0
  %125 = vmatpush.msra.mxu0 0.0
  %126 = vmatpush.msra.mxu0 0.0
  %127 = vmatpush.msra.mxu0 0.0
  %128 = vmatpush.msra.mxu0 0.0
  %129 = vmatpush.msra.mxu0 0.0
  %130 = vmatpush.msra.mxu0 0.0
  %131 = vmatpush.msra.mxu0 0.0
  %132 = vmatpush.msra.mxu0 0.0
  %133 = vmatpush.msra.mxu0 0.0
  %134 = vmatpush.msra.mxu0 %v114
  %135 = vmatpush.msra.mxu0 %v113
  %136 = vmatpush.msra.mxu0 %v112
  %137 = vmatpush.msra.mxu0 %v111
  %138 = vmatpush.msra.mxu0 %v110
  %139 = vmatmul.f32.gmra.mxu0 %v121
  %v140 = vpop.f32.mrf.mxu0
  %v141 = vadd.f32 %v117, %v140
  %142 = vdwg.mxu0
  %v143 = vtanh.pop %v141
  %v144 = vld [vmem:[%s7] sm:$0xff]
  %v145 = vld [vmem:[%s7 + $0x8] sm:$0xff]
  %v146 = vld [vmem:[%s7 + $0x10] sm:$0xf]
  %v147 = vld [vmem:[%s8] sm:$0x1]
  %v149 = vperm.slane %v147, 0
  %vm151 = vcmask 162816
  %v153 = vsel %vm151, %v143, 0
  %vm155 = vcmask 1043456
  %v157 = vsel %vm155, %v146, 0
  %159 = vmatpush.msra.mxu0 0.0
  %160 = vmatpush.msra.mxu0 0.0
  %161 = vmatpush.msra.mxu0 0.0
  %162 = vmatpush.msra.mxu0 0.0
  %163 = vmatpush.msra.mxu0 0.0
  %164 = vmatpush.msra.mxu0 0.0
  %165 = vmatpush.msra.mxu0 0.0
  %166 = vmatpush.msra.mxu0 0.0
  %167 = vmatpush.msra.mxu0 0.0
  %168 = vmatpush.msra.mxu0 0.0
  %169 = vmatpush.msra.mxu0 0.0
  %170 = vmatpush.msra.mxu0 0.0
  %171 = vmatpush.msra.mxu0 0.0
  %172 = vmatpush.msra.mxu0 %v157
  %173 = vmatpush.msra.mxu0 %v145
  %174 = vmatpush.msra.mxu0 %v144
  %175 = vmatmul.f32.gmra.mxu0 %v153
  %v176 = vpop.f32.mrf.mxu0
  %v177 = vadd.f32 %v149, %v176
  %178 = vdwg.mxu0
  %v179 = vtanh.pop %v177
  %v180 = vld [vmem:[%s9] sm:$0xff]
  %v181 = vld [vmem:[%s9 + $0x8] sm:$0x3]
  %v182 = vld [vmem:[%s10] sm:$0x1]
  %v184 = vperm.slane %v182, 0
  %vm186 = vcmask 80896
  %v188 = vsel %vm186, %v179, 0
  %vm190 = vcmask 1041408
  %v192 = vsel %vm190, %v181, 0
  %194 = vmatpush.msra.mxu0 0.0
  %195 = vmatpush.msra.mxu0 0.0
  %196 = vmatpush.msra.mxu0 0.0
  %197 = vmatpush.msra.mxu0 0.0
  %198 = vmatpush.msra.mxu0 0.0
  %199 = vmatpush.msra.mxu0 0.0
  %200 = vmatpush.msra.mxu0 0.0
  %201 = vmatpush.msra.mxu0 0.0
  %202 = vmatpush.msra.mxu0 0.0
  %203 = vmatpush.msra.mxu0 0.0
  %204 = vmatpush.msra.mxu0 0.0
  %205 = vmatpush.msra.mxu0 0.0
  %206 = vmatpush.msra.mxu0 0.0
  %207 = vmatpush.msra.mxu0 0.0
  %208 = vmatpush.msra.mxu0 %v192
  %209 = vmatpush.msra.mxu0 %v180
  %210 = vmatmul.f32.gmra.mxu0 %v188
  %v211 = vpop.f32.mrf.mxu0
  %v212 = vadd.f32 %v184, %v211
  %213 = vdwg.mxu0
  %v214 = vld [vmem:[%s11] sm:$0xff]
  %216 = vrot.lane.b32.xlu0 %v212, 127
  %v217 = vpop.permute.xlu0 %216
  %v219 = vmax.f32 %v212, %v217
  %v220 = vsub.f32 %v212, %v219
  %v221 = vmul.f32 %v220, 1.442695
  %v222 = vpow.pop %v221
  %224 = vrot.lane.b32.xlu0 %v219, 1
  %v225 = vpop.permute.xlu0 %224
  %v227 = vsub.f32 %v212, %v225
  %v228 = vmul.f32 %v227, 1.442695
  %v229 = vpow.pop %v228
  %231 = vrot.lane.b32.xlu0 %v229, 127
  %v232 = vpop.permute.xlu0 %231
  %v234 = vadd.f32 %v222, %v232
  %v235 = vlog2.pop %v234
  %v236 = vmul.f32 %v235, 0.6931472
  %v237 = vadd.f32 %v219, %v236
  %vm238 = vcmp.eq.s32.totalorder %v214, 0
  %v239 = vsel %vm238, %v212, %v217
  %v240 = vsub.f32 %v237, %v239
  %vm241 = vcmask 7168
  %242 = vst.msk [vmem:[%s12] sm:$0xff] %vm241, %v240
  // Predicated region
  $region50: #{tpu_custom_call.1} parent=0 // pred_check
    _
  $region51: #{tpu_custom_call.1} parent=0 // pred_check_branch
    %244 = sbr.rel (0) target = $region53
  $region52: #{tpu_custom_call.1} parent=0 // pred_region
    _
  $region53: #{tpu_custom_call.1} parent=0 // pred_fallthru
    _
  // Predicated region
  $region54: #{tpu_custom_call.1} parent=0 // pred_check
    _
  $region55: #{tpu_custom_call.1} parent=0 // pred_check_branch
    %246 = sbr.rel (0) target = $region57
  $region56: #{tpu_custom_call.1} parent=0 // pred_region
    _
  $region57: #{tpu_custom_call.1} parent=0 // pred_fallthru
    _

</llo_original>
